<compile_context>
chip_gen: v5e
topology: v5e:2x2
jax: 0.10.0
libtpu: 0.0.40
codegen_flags: <defaults>
</compile_context>

<pallas_src>
import jax
import jax.numpy as jnp
from jax import lax
from jax.experimental import pallas as pl
from jax.experimental.pallas import tpu as pltpu


def stsgcm_kernel(x_ref, adjc_ref, w_ref, b_ref, o_ref):
    # x_ref   : (C, Bt*T, 3N) bf16  -- channel-major block covering Bt batch elements
    # adjc_ref: (3N, N)       bf16  -- adj[N:2N, :].T  (aggregation + center crop fused)
    # w_ref   : (G*C, C)      bf16  -- all gcn branches' channel-mix weights, stacked
    # b_ref   : (G*C, 1)      f32   -- stacked biases
    # o_ref   : (C, Bt*T, N)  f32   -- cropped output block
    x = x_ref[...]
    C, M, _ = x.shape
    G = w_ref.shape[0] // C

    # Graph aggregation shared by all branches; crop already applied via adj columns:
    #   y[c, m, v] = sum_u x[c, m, u] * adj[N + v, u]
    y = lax.dot_general(x, adjc_ref[...], (((2,), (0,)), ((), ())),
                        preferred_element_type=jnp.float32)        # (C, M, N) f32
    y = y.astype(jnp.bfloat16)

    # Fused channel mix for all G branches in a single MXU pass:
    #   z[g*C + o, m, v] = sum_c W[g, o, c] * y[c, m, v]
    z = lax.dot_general(w_ref[...], y, (((1,), (0,)), ((), ())),
                        preferred_element_type=jnp.float32)        # (G*C, M, N) f32
    z = jnp.maximum(z + b_ref[...][:, :, None], 0.0)               # bias + ReLU (f32 VPU)

    # torch.max over the gcn branch stack (G is small & static -> unrolled VPU max chain).
    acc = z[0:C]
    for g in range(1, G):
        acc = jnp.maximum(acc, z[g * C:(g + 1) * C])
    o_ref[...] = acc.astype(o_ref.dtype)


def _pick_batch_block(B, C, T, V3, N, budget_bytes=8 << 20):
    """Largest batch block Bt (dividing B) whose double-buffered in/out tiles fit a
    conservative VMEM budget (safe for v7x's 64 MiB VMEM). Bigger Bt = larger MXU M
    and fewer grid steps; small problems collapse to a single grid step."""
    best = B
    found = False
    for bt in range(1, B + 1):
        if B % bt:
            continue
        if bt != B and (bt * T) % 8 != 0:      # keep the BlockSpec sublane dim legal
            continue
        blk = 2 * (C * bt * T * V3 * 2 + C * bt * T * N * 4)   # 2x for double buffering
        if blk <= budget_bytes:
            best, found = bt, True
    return best if found else B


def stsgcm_pallas(x, adj, w, b):
    """x: (B, C, T, 3N) f32, adj: (3N, 3N), w: (G, C, C), b: (G, C) -> (B, C, T, N)."""
    B, C, T, V3 = x.shape
    N = V3 // 3
    G = w.shape[0]

    # Fold the center crop into the aggregation operand: adjc[u, v] = adj[N + v, u].
    adjc = adj[N:2 * N, :].T.astype(jnp.bfloat16)                  # (3N, N)
    # Channel-major layout; batch folded next to time so it lands in the matmul M dim.
    x_t = jnp.transpose(x, (1, 0, 2, 3)).reshape(C, B * T, V3).astype(jnp.bfloat16)
    w_s = w.reshape(G * C, C).astype(jnp.bfloat16)
    b_s = b.reshape(G * C, 1).astype(jnp.float32)

    Bt = _pick_batch_block(B, C, T, V3, N)
    MT = Bt * T

    out = pl.pallas_call(
        stsgcm_kernel,
        out_shape=jax.ShapeDtypeStruct((C, B * T, N), x.dtype),
        grid_spec=pltpu.PrefetchScalarGridSpec(
            num_scalar_prefetch=0,
            grid=(B // Bt,),
            in_specs=[
                pl.BlockSpec((C, MT, V3), lambda i: (0, i, 0)),
                pl.BlockSpec((V3, N), lambda i: (0, 0)),        # VMEM-resident
                pl.BlockSpec((G * C, C), lambda i: (0, 0)),     # VMEM-resident
                pl.BlockSpec((G * C, 1), lambda i: (0, 0)),     # VMEM-resident
            ],
            out_specs=pl.BlockSpec((C, MT, N), lambda i: (0, i, 0)),
        ),
        compiler_params=pltpu.CompilerParams(
            dimension_semantics=("parallel",),
            vmem_limit_bytes=32 * 1024 * 1024,
        ),
    )(x_t, adjc, w_s, b_s)

    # (C, B*T, N) -> (B, C, T, N)
    return jnp.transpose(out.reshape(C, B, T, N), (1, 0, 2, 3))


def stsgcm_ref(x, adj, w, b):
    """Pure-JAX f32 reference of the same semantics."""
    y = jnp.einsum('vu,bctu->bctv', adj, x)
    z = jnp.einsum('goc,bctv->gbotv', w, y) + b[:, None, :, None, None]
    z = jnp.maximum(z, 0.0)
    z = jnp.max(z, axis=0)
    N = x.shape[-1] // 3
    return z[..., N:-N]


if __name__ == "__main__":
    # Small synthetic shapes consistent with the module:
    #   batch=2, n_channel=4, n_time(= n_his - layer*2)=8, n_vertex=16, gcn_num=3
    B, C, T, NV, G = 2, 4, 8, 16, 3
    V3 = 3 * NV

    key = jax.random.PRNGKey(0)
    kx, ka, kw, kb = jax.random.split(key, 4)
    x = jax.random.normal(kx, (B, C, T, V3), dtype=jnp.float32)
    adj = jax.random.uniform(ka, (V3, V3), dtype=jnp.float32)
    adj = adj / jnp.sum(adj, axis=1, keepdims=True)          # row-normalized adjacency
    w = jax.random.normal(kw, (G, C, C), dtype=jnp.float32) * 0.1
    b = jax.random.normal(kb, (G, C), dtype=jnp.float32) * 0.1

    out = jax.block_until_ready(stsgcm_pallas(x, adj, w, b))
    ref = stsgcm_ref(x, adj, w, b)

    assert out.shape == (B, C, T, NV), out.shape
    # bf16 MXU operands with f32 accumulation -> compare against the f32 reference with a
    # bf16-appropriate tolerance.
    max_err = float(jnp.max(jnp.abs(out - ref)))
    assert jnp.allclose(out, ref, atol=3e-2, rtol=3e-2), f"mismatch vs reference (max_err={max_err})"
    print("KERNEL_OK")
</pallas_src>

<mosaic_0001>
module attributes {stable_mosaic.version = 11 : i64} {
  func.func @stsgcm_kernel(%arg0: i32, %arg1: memref<4x16x48xbf16, #tpu.memory_space<vmem>>, %arg2: memref<48x16xbf16, #tpu.memory_space<vmem>>, %arg3: memref<12x4xbf16, #tpu.memory_space<vmem>>, %arg4: memref<12x1xf32, #tpu.memory_space<vmem>>, %arg5: memref<4x16x16xf32, #tpu.memory_space<vmem>>) attributes {dimension_semantics = [#tpu.dimension_semantics<parallel>], iteration_bounds = array<i64: 1>, scalar_prefetch = 0 : i64, scratch_operands = 0 : i64, tpu.core_type = #tpu.core_type<tc>, window_params = [{transform_indices = @transform_0, window_bounds = array<i64: 4, 16, 48>}, {pipeline_mode = #tpu.pipeline_mode<synchronous>, transform_indices = @transform_1, window_bounds = array<i64: 48, 16>}, {pipeline_mode = #tpu.pipeline_mode<synchronous>, transform_indices = @transform_2, window_bounds = array<i64: 12, 4>}, {pipeline_mode = #tpu.pipeline_mode<synchronous>, transform_indices = @transform_3, window_bounds = array<i64: 12, 1>}, {transform_indices = @transform_4, window_bounds = array<i64: 4, 16, 16>}]} {
    %c0 = arith.constant 0 : index
    %c0_0 = arith.constant 0 : index
    %c0_1 = arith.constant 0 : index
    %0 = vector.load %arg1[%c0, %c0_0, %c0_1] : memref<4x16x48xbf16, #tpu.memory_space<vmem>>, vector<4x16x48xbf16>
    %c0_2 = arith.constant 0 : index
    %c0_3 = arith.constant 0 : index
    %1 = vector.load %arg2[%c0_2, %c0_3] : memref<48x16xbf16, #tpu.memory_space<vmem>>, vector<48x16xbf16>
    %cst = arith.constant dense<0.000000e+00> : vector<4x16x16xf32>
    %2 = tpu.matmul %0, %1, %cst {dimension_numbers = #tpu.dot_dimension_numbers<[2], [0], [0, 1], [1], [0, 0, 0, 1, 1, 1], [], []>} : vector<4x16x48xbf16>, vector<48x16xbf16>, vector<4x16x16xf32> -> vector<4x16x16xf32>
    %3 = arith.truncf %2 : vector<4x16x16xf32> to vector<4x16x16xbf16>
    %c0_4 = arith.constant 0 : index
    %c0_5 = arith.constant 0 : index
    %4 = vector.load %arg3[%c0_4, %c0_5] : memref<12x4xbf16, #tpu.memory_space<vmem>>, vector<12x4xbf16>
    %cst_6 = arith.constant dense<0.000000e+00> : vector<12x16x16xf32>
    %5 = tpu.matmul %4, %3, %cst_6 {dimension_numbers = #tpu.dot_dimension_numbers<[1], [0], [0], [1, 2], [0, 0, 1, 1, 1, 2], [], []>} : vector<12x4xbf16>, vector<4x16x16xbf16>, vector<12x16x16xf32> -> vector<12x16x16xf32>
    %c0_7 = arith.constant 0 : index
    %c0_8 = arith.constant 0 : index
    %6 = vector.load %arg4[%c0_7, %c0_8] : memref<12x1xf32, #tpu.memory_space<vmem>>, vector<12x1xf32>
    %7 = vector.shape_cast %6 : vector<12x1xf32> to vector<12x1x1xf32>
    %8 = vector.broadcast %7 : vector<12x1x1xf32> to vector<12x16x16xf32>
    %9 = arith.addf %5, %8 : vector<12x16x16xf32>
    %cst_9 = arith.constant 0.000000e+00 : f32
    %10 = vector.broadcast %cst_9 : f32 to vector<12x16x16xf32>
    %11 = arith.maximumf %9, %10 : vector<12x16x16xf32>
    %12 = vector.extract_strided_slice %11 {offsets = [0, 0, 0], sizes = [4, 16, 16], strides = [1, 1, 1]} : vector<12x16x16xf32> to vector<4x16x16xf32>
    %13 = vector.extract_strided_slice %11 {offsets = [4, 0, 0], sizes = [4, 16, 16], strides = [1, 1, 1]} : vector<12x16x16xf32> to vector<4x16x16xf32>
    %14 = arith.maximumf %12, %13 : vector<4x16x16xf32>
    %15 = vector.extract_strided_slice %11 {offsets = [8, 0, 0], sizes = [4, 16, 16], strides = [1, 1, 1]} : vector<12x16x16xf32> to vector<4x16x16xf32>
    %16 = arith.maximumf %14, %15 : vector<4x16x16xf32>
    %c0_10 = arith.constant 0 : index
    %c0_11 = arith.constant 0 : index
    %c0_12 = arith.constant 0 : index
    %17 = vector.load %arg5[%c0_10, %c0_11, %c0_12] : memref<4x16x16xf32, #tpu.memory_space<vmem>>, vector<4x16x16xf32>
    tpu.vector_store %arg5[%c0_10, %c0_11, %c0_12], %16 {strides = array<i32>} : memref<4x16x16xf32, #tpu.memory_space<vmem>>, vector<4x16x16xf32>,
    return
  }
  func.func @transform_0(%arg0: i32) -> (i32, i32, i32) {
    %c0_i32 = arith.constant 0 : i32
    %c0_i32_0 = arith.constant 0 : i32
    %c0_i32_1 = arith.constant 0 : i32
    return %c0_i32, %arg0, %c0_i32_0 : i32, i32, i32
  }
  func.func @transform_1(%arg0: i32) -> (i32, i32) {
    %c0_i32 = arith.constant 0 : i32
    %c0_i32_0 = arith.constant 0 : i32
    %c0_i32_1 = arith.constant 0 : i32
    return %c0_i32, %c0_i32_0 : i32, i32
  }
  func.func @transform_2(%arg0: i32) -> (i32, i32) {
    %c0_i32 = arith.constant 0 : i32
    %c0_i32_0 = arith.constant 0 : i32
    %c0_i32_1 = arith.constant 0 : i32
    return %c0_i32, %c0_i32_0 : i32, i32
  }
  func.func @transform_3(%arg0: i32) -> (i32, i32) {
    %c0_i32 = arith.constant 0 : i32
    %c0_i32_0 = arith.constant 0 : i32
    %c0_i32_1 = arith.constant 0 : i32
    return %c0_i32, %c0_i32_0 : i32, i32
  }
  func.func @transform_4(%arg0: i32) -> (i32, i32, i32) {
    %c0_i32 = arith.constant 0 : i32
    %c0_i32_0 = arith.constant 0 : i32
    %c0_i32_1 = arith.constant 0 : i32
    return %c0_i32, %arg0, %c0_i32_0 : i32, i32, i32
  }
}

</mosaic_0001>

<llo_original>
// kernel: tpu_custom_call.1
$region0: #{tpu_custom_call.1}
  #allocation0 [shape = 'u32[]', space=smem, size = 0x4, offset = 0x4, fixed_abs, tag = 'smem constant byte address 0x4 - core index']
  #allocation1 [shape = 'u32[72,128]{1,0:T(1,128)}', space=vmem, size = 0x9000, scoped, tag = 'internal scratch']
  %s0 = inlined_call_operand.vmem [shape: bf16[4,16,48], index: 0, kind: input, shape index: {}]
  %s1 = inlined_call_operand.vmem [shape: bf16[48,16], index: 1, kind: input, shape index: {}]
  %s2 = inlined_call_operand.vmem [shape: bf16[12,4], index: 2, kind: input, shape index: {}]
  %s3 = inlined_call_operand.vmem [shape: f32[12,1], index: 3, kind: input, shape index: {}]
  %s4 = inlined_call_operand.hbm [shape: f32[4,16,16], index: 4, kind: output, shape index: {}]
  %s5 = sld [smem:[#allocation0]]
  $region26: #{tpu_custom_call.1} parent=0
    _
  %s7 = ssub.s32 1, %s5
  %s8 = scalar_select 0, %s7, %s5
  $region1: #{tpu_custom_call.1} parent=0
    #allocation2 [shape = 'u8[32768]{0}', space=vmem, size = 0x8000, scoped, tag = 'output window, operand 0, single buffered']
    #allocation3 [shape = 's32[1]{0}', space=sflag, size = 0x4, scoped, tag = 'scoped memory for tpu_custom_call.1']
    %9 = vsyncpa [#allocation3], 0
    // Predicated region
    $region2: #{tpu_custom_call.1} parent=1 // pred_check
      _
    $region3: #{tpu_custom_call.1} parent=1 // pred_check_branch
      %11 = sbr.rel (0) target = $region5
    $region4: #{tpu_custom_call.1} parent=1 // pred_region
      _
    $region5: #{tpu_custom_call.1} parent=1 // pred_fallthru
      _
    // Predicated region
    $region6: #{tpu_custom_call.1} parent=1 // pred_check
      _
    $region7: #{tpu_custom_call.1} parent=1 // pred_check_branch
      %13 = sbr.rel (0) target = $region9
    $region8: #{tpu_custom_call.1} parent=1 // pred_region
      _
    $region9: #{tpu_custom_call.1} parent=1 // pred_fallthru
      _
    // Predicated region
    $region10: #{tpu_custom_call.1} parent=1 // pred_check
      _
    $region11: #{tpu_custom_call.1} parent=1 // pred_check_branch
      %15 = sbr.rel (0) target = $region13
    $region12: #{tpu_custom_call.1} parent=1 // pred_region
      _
    $region13: #{tpu_custom_call.1} parent=1 // pred_fallthru
      _
    // Predicated region
    $region14: #{tpu_custom_call.1} parent=1 // pred_check
      _
    $region15: #{tpu_custom_call.1} parent=1 // pred_check_branch
      %17 = sbr.rel (0) target = $region17
    $region16: #{tpu_custom_call.1} parent=1 // pred_region
      _
    $region17: #{tpu_custom_call.1} parent=1 // pred_fallthru
      _
    %v19 = vld [vmem:[%s0] sm:$0xf]
    %v20 = vld [vmem:[%s0 + $0x4] sm:$0xf]
    %v21 = vld [vmem:[%s0 + $0x8] sm:$0xf]
    %v22 = vld [vmem:[%s0 + $0xc] sm:$0xf]
    %v23 = vld [vmem:[%s0 + $0x10] sm:$0xf]
    %v24 = vld [vmem:[%s0 + $0x14] sm:$0xf]
    %v25 = vld [vmem:[%s0 + $0x18] sm:$0xf]
    %v26 = vld [vmem:[%s0 + $0x1c] sm:$0xf]
    %v27 = vld [vmem:[%s1] sm:$0xf]
    %v28 = vld [vmem:[%s1 + $0x4] sm:$0xf]
    %v29 = vld [vmem:[%s1 + $0x8] sm:$0xf]
    %v30 = vld [vmem:[%s1 + $0xc] sm:$0xf]
    %v31 = vld [vmem:[%s1 + $0x10] sm:$0xf]
    %v32 = vld [vmem:[%s1 + $0x14] sm:$0xf]
    %v41 = vunpack.c.l.b16 %v19
    %v42 = vunpack.c.l.b16 %v20
    %v43 = vunpack.c.l.b16 %v21
    %v44 = vunpack.c.l.b16 %v22
    %v45 = vunpack.c.l.b16 %v23
    %v46 = vunpack.c.l.b16 %v24
    %v47 = vunpack.c.l.b16 %v25
    %v48 = vunpack.c.l.b16 %v26
    %v49 = vpack.c.b16 %v42, %v41
    %v50 = vpack.c.b16 %v44, %v43
    %v51 = vpack.c.b16 %v46, %v45
    %v52 = vpack.c.b16 %v48, %v47
    %v59 = vunpack.c.l.b16 %v27
    %v60 = vunpack.c.l.b16 %v28
    %v61 = vunpack.c.l.b16 %v29
    %v62 = vunpack.c.l.b16 %v30
    %v63 = vunpack.c.l.b16 %v31
    %v64 = vunpack.c.l.b16 %v32
    %v65 = vpack.c.b16 %v60, %v59
    %v66 = vpack.c.b16 %v62, %v61
    %v67 = vpack.c.b16 %v64, %v63
    %vm71 = vcmask 392192
    %v73 = vsel %vm71, %v49, 0
    %v76 = vsel %vm71, %v50, 0
    %v79 = vsel %vm71, %v51, 0
    %v82 = vsel %vm71, %v52, 0
    %84 = vmatpush.bf16.msra.mxu0 0
    %85 = vmatpush.bf16.msra.mxu0 0
    %86 = vmatpush.bf16.msra.mxu0 0
    %87 = vmatpush.bf16.msra.mxu0 0
    %88 = vmatpush.bf16.msra.mxu0 0
    %89 = vmatpush.bf16.msra.mxu0 %v67
    %90 = vmatpush.bf16.msra.mxu0 %v66
    %91 = vmatpush.bf16.msra.mxu0 %v65
    %92 = vmatmul.bf16.gmra.mxu0 %v73
    %v93 = vpop.f32.mrf.mxu0
    %v94 = vadd.f32 0.0, %v93
    %v95 = vpop.f32.mrf.mxu0
    %v96 = vadd.f32 0.0, %v95
    %97 = vmatmul.bf16.gmra.mxu0 %v76
    %v98 = vpop.f32.mrf.mxu0
    %v99 = vadd.f32 0.0, %v98
    %v100 = vpop.f32.mrf.mxu0
    %v101 = vadd.f32 0.0, %v100
    %102 = vmatmul.bf16.gmra.mxu0 %v79
    %v103 = vpop.f32.mrf.mxu0
    %v104 = vadd.f32 0.0, %v103
    %v105 = vpop.f32.mrf.mxu0
    %v106 = vadd.f32 0.0, %v105
    %107 = vmatmul.bf16.gmra.mxu0 %v82
    %v108 = vpop.f32.mrf.mxu0
    %v109 = vadd.f32 0.0, %v108
    %v110 = vpop.f32.mrf.mxu0
    %v111 = vadd.f32 0.0, %v110
    %112 = vdwg.mxu0
    %v113 = vpack.c.bf16 %v94, %v94
    %v114 = vpack.c.bf16 %v96, %v96
    %v115 = vpack.c.bf16 %v99, %v99
    %v116 = vpack.c.bf16 %v101, %v101
    %v117 = vpack.c.bf16 %v104, %v104
    %v118 = vpack.c.bf16 %v106, %v106
    %v119 = vpack.c.bf16 %v109, %v109
    %v120 = vpack.c.bf16 %v111, %v111
    %v121 = vld [vmem:[%s2] sm:$0xf]
    %v122 = vld [vmem:[%s2 + $0x4] sm:$0x3]
    %v123 = vld [vmem:[%s3] sm:$0xff]
    %v124 = vld [vmem:[%s3 + $0x8] sm:$0xf]
    %v127 = vrot.slane %v123, 1
    %v128 = vrot.slane %v123, 2
    %v129 = vrot.slane %v123, 3
    %v130 = vrot.slane %v123, 4
    %v131 = vrot.slane %v123, 5
    %v132 = vrot.slane %v123, 6
    %v133 = vrot.slane %v123, 7
    %v134 = vrot.slane %v124, 1
    %v135 = vrot.slane %v124, 2
    %v136 = vrot.slane %v124, 3
    %v137 = vperm.slane %v123, 0
    %v138 = vperm.slane %v127, 0
    %v139 = vperm.slane %v128, 0
    %v140 = vperm.slane %v129, 0
    %v141 = vperm.slane %v130, 0
    %v142 = vperm.slane %v131, 0
    %v143 = vperm.slane %v132, 0
    %v144 = vperm.slane %v133, 0
    %v145 = vperm.slane %v124, 0
    %v146 = vperm.slane %v134, 0
    %v147 = vperm.slane %v135, 0
    %v148 = vperm.slane %v136, 0
    %149 = vset.pattern.permute.xlu0 0
    %150 = vperm.xlu0 %149, %v137
    %v151 = vpop.permute.xlu0 %150
    %153 = vset.pattern.permute.xlu0 0
    %154 = vperm.xlu0 %153, %v138
    %v155 = vpop.permute.xlu0 %154
    %157 = vset.pattern.permute.xlu0 0
    %158 = vperm.xlu0 %157, %v139
    %v159 = vpop.permute.xlu0 %158
    %161 = vset.pattern.permute.xlu0 0
    %162 = vperm.xlu0 %161, %v140
    %v163 = vpop.permute.xlu0 %162
    %165 = vset.pattern.permute.xlu0 0
    %166 = vperm.xlu0 %165, %v141
    %v167 = vpop.permute.xlu0 %166
    %169 = vset.pattern.permute.xlu0 0
    %170 = vperm.xlu0 %169, %v142
    %v171 = vpop.permute.xlu0 %170
    %173 = vset.pattern.permute.xlu0 0
    %174 = vperm.xlu0 %173, %v143
    %v175 = vpop.permute.xlu0 %174
    %177 = vset.pattern.permute.xlu0 0
    %178 = vperm.xlu0 %177, %v144
    %v179 = vpop.permute.xlu0 %178
    %181 = vset.pattern.permute.xlu0 0
    %182 = vperm.xlu0 %181, %v145
    %v183 = vpop.permute.xlu0 %182
    %185 = vset.pattern.permute.xlu0 0
    %186 = vperm.xlu0 %185, %v146
    %v187 = vpop.permute.xlu0 %186
    %189 = vset.pattern.permute.xlu0 0
    %190 = vperm.xlu0 %189, %v147
    %v191 = vpop.permute.xlu0 %190
    %193 = vset.pattern.permute.xlu0 0
    %194 = vperm.xlu0 %193, %v148
    %v195 = vpop.permute.xlu0 %194
    %v199 = vpack.i.b16 %v115, %v113
    %v200 = vshrl.u32 %v113, 16
    %v201 = vshrl.u32 %v115, 16
    %v202 = vpack.i.b16 %v201, %v200
    %v205 = vpack.i.b16 %v119, %v117
    %v206 = vshrl.u32 %v117, 16
    %v207 = vshrl.u32 %v119, 16
    %v208 = vpack.i.b16 %v207, %v206
    %v211 = vpack.i.b16 %v116, %v114
    %v212 = vshrl.u32 %v114, 16
    %v213 = vshrl.u32 %v116, 16
    %v214 = vpack.i.b16 %v213, %v212
    %v217 = vpack.i.b16 %v120, %v118
    %v218 = vshrl.u32 %v118, 16
    %v219 = vshrl.u32 %v120, 16
    %v220 = vpack.i.b16 %v219, %v218
    %v223 = vunpack.c.l.s4 1983009808
    %v224 = vunpack.c.0.s8 %v223
    %v225 = vperm.slane %v199, %v224
    %v228 = vunpack.c.l.s4 1983009808
    %v229 = vunpack.c.0.s8 %v228
    %v230 = vperm.slane %v205, %v229
    %v231 = vrot.slane %v230, 4
    %vm232 = vcmask 1047556
    %v233 = vsel %vm232, %v231, %v225
    %v234 = vrot.slane %v225, 4
    %v235 = vsel %vm232, %v230, %v234
    %v237 = vunpack.c.l.s4 1934713408
    %v238 = vunpack.c.0.s8 %v237
    %v239 = vperm.slane %v233, %v238
    %v241 = vunpack.c.l.s4 1934713408
    %v242 = vunpack.c.0.s8 %v241
    %v243 = vperm.slane %v235, %v242
    %v244 = vrot.slane %v239, 4
    %v245 = vsel %vm232, 0, %v244
    %v246 = vrot.slane %v243, 4
    %v247 = vsel %vm232, 0, %v246
    %v250 = vunpack.c.l.s4 1983009808
    %v251 = vunpack.c.0.s8 %v250
    %v252 = vperm.slane %v202, %v251
    %v255 = vunpack.c.l.s4 1983009808
    %v256 = vunpack.c.0.s8 %v255
    %v257 = vperm.slane %v208, %v256
    %v258 = vrot.slane %v257, 4
    %v259 = vsel %vm232, %v258, %v252
    %v260 = vrot.slane %v252, 4
    %v261 = vsel %vm232, %v257, %v260
    %v263 = vunpack.c.l.s4 1934713408
    %v264 = vunpack.c.0.s8 %v263
    %v265 = vperm.slane %v259, %v264
    %v267 = vunpack.c.l.s4 1934713408
    %v268 = vunpack.c.0.s8 %v267
    %v269 = vperm.slane %v261, %v268
    %v270 = vrot.slane %v265, 4
    %v271 = vsel %vm232, 0, %v270
    %v272 = vrot.slane %v269, 4
    %v273 = vsel %vm232, 0, %v272
    %v276 = vunpack.c.l.s4 1983009808
    %v277 = vunpack.c.0.s8 %v276
    %v278 = vperm.slane %v211, %v277
    %v281 = vunpack.c.l.s4 1983009808
    %v282 = vunpack.c.0.s8 %v281
    %v283 = vperm.slane %v217, %v282
    %v284 = vrot.slane %v283, 4
    %v285 = vsel %vm232, %v284, %v278
    %v286 = vrot.slane %v278, 4
    %v287 = vsel %vm232, %v283, %v286
    %v289 = vunpack.c.l.s4 1934713408
    %v290 = vunpack.c.0.s8 %v289
    %v291 = vperm.slane %v285, %v290
    %v293 = vunpack.c.l.s4 1934713408
    %v294 = vunpack.c.0.s8 %v293
    %v295 = vperm.slane %v287, %v294
    %v296 = vrot.slane %v291, 4
    %v297 = vsel %vm232, 0, %v296
    %v298 = vrot.slane %v295, 4
    %v299 = vsel %vm232, 0, %v298
    %v302 = vunpack.c.l.s4 1983009808
    %v303 = vunpack.c.0.s8 %v302
    %v304 = vperm.slane %v214, %v303
    %v307 = vunpack.c.l.s4 1983009808
    %v308 = vunpack.c.0.s8 %v307
    %v309 = vperm.slane %v220, %v308
    %v310 = vrot.slane %v309, 4
    %v311 = vsel %vm232, %v310, %v304
    %v312 = vrot.slane %v304, 4
    %v313 = vsel %vm232, %v309, %v312
    %v315 = vunpack.c.l.s4 1934713408
    %v316 = vunpack.c.0.s8 %v315
    %v317 = vperm.slane %v311, %v316
    %v319 = vunpack.c.l.s4 1934713408
    %v320 = vunpack.c.0.s8 %v319
    %v321 = vperm.slane %v313, %v320
    %v322 = vrot.slane %v317, 4
    %v323 = vsel %vm232, 0, %v322
    %v324 = vrot.slane %v321, 4
    %v325 = vsel %vm232, 0, %v324
    %v327 = vunpack.c.l.b16 %v265
    %v328 = vpack.c.b16 %v327, %v327
    %329 = vrot.lane.b32.xlu0 %v328, 16
    %v330 = vpop.permute.xlu0 %329
    %v332 = vunpack.c.l.b16 %v245
    %v333 = vpack.c.b16 %v332, %v332
    %334 = vrot.lane.b32.xlu0 %v333, 32
    %v335 = vpop.permute.xlu0 %334
    %v337 = vunpack.c.l.b16 %v271
    %v338 = vpack.c.b16 %v337, %v337
    %339 = vrot.lane.b32.xlu0 %v338, 48
    %v340 = vpop.permute.xlu0 %339
    %v342 = vunpack.c.l.b16 %v243
    %v343 = vpack.c.b16 %v342, %v342
    %344 = vrot.lane.b32.xlu0 %v343, 64
    %v345 = vpop.permute.xlu0 %344
    %v347 = vunpack.c.l.b16 %v269
    %v348 = vpack.c.b16 %v347, %v347
    %349 = vrot.lane.b32.xlu0 %v348, 80
    %v350 = vpop.permute.xlu0 %349
    %v352 = vunpack.c.l.b16 %v247
    %v353 = vpack.c.b16 %v352, %v352
    %354 = vrot.lane.b32.xlu0 %v353, 96
    %v355 = vpop.permute.xlu0 %354
    %v357 = vunpack.c.l.b16 %v273
    %v358 = vpack.c.b16 %v357, %v357
    %359 = vrot.lane.b32.xlu0 %v358, 112
    %v360 = vpop.permute.xlu0 %359
    %v362 = vunpack.c.l.b16 %v317
    %v363 = vpack.c.b16 %v362, %v362
    %364 = vrot.lane.b32.xlu0 %v363, 16
    %v365 = vpop.permute.xlu0 %364
    %v367 = vunpack.c.l.b16 %v297
    %v368 = vpack.c.b16 %v367, %v367
    %369 = vrot.lane.b32.xlu0 %v368, 32
    %v370 = vpop.permute.xlu0 %369
    %v372 = vunpack.c.l.b16 %v323
    %v373 = vpack.c.b16 %v372, %v372
    %374 = vrot.lane.b32.xlu0 %v373, 48
    %v375 = vpop.permute.xlu0 %374
    %v377 = vunpack.c.l.b16 %v295
    %v378 = vpack.c.b16 %v377, %v377
    %379 = vrot.lane.b32.xlu0 %v378, 64
    %v380 = vpop.permute.xlu0 %379
    %v382 = vunpack.c.l.b16 %v321
    %v383 = vpack.c.b16 %v382, %v382
    %384 = vrot.lane.b32.xlu0 %v383, 80
    %v385 = vpop.permute.xlu0 %384
    %v387 = vunpack.c.l.b16 %v299
    %v388 = vpack.c.b16 %v387, %v387
    %389 = vrot.lane.b32.xlu0 %v388, 96
    %v390 = vpop.permute.xlu0 %389
    %v392 = vunpack.c.l.b16 %v325
    %v393 = vpack.c.b16 %v392, %v392
    %394 = vrot.lane.b32.xlu0 %v393, 112
    %v395 = vpop.permute.xlu0 %394
    %vm396 = vcmask 130048
    %v399 = vsel %vm396, %v239, %v330
    %vm400 = vcmask 261120
    %v402 = vsel %vm400, %v399, %v335
    %v404 = vsel %vm71, %v402, %v340
    %vm405 = vcmask 523264
    %v407 = vsel %vm405, %v404, %v345
    %vm408 = vcmask 654336
    %v410 = vsel %vm408, %v407, %v350
    %vm411 = vcmask 785408
    %v413 = vsel %vm411, %v410, %v355
    %vm414 = vcmask 916480
    %v416 = vsel %vm414, %v413, %v360
    %v419 = vsel %vm396, %v291, %v365
    %v421 = vsel %vm400, %v419, %v370
    %v423 = vsel %vm71, %v421, %v375
    %v425 = vsel %vm405, %v423, %v380
    %v427 = vsel %vm408, %v425, %v385
    %v429 = vsel %vm411, %v427, %v390
    %v431 = vsel %vm414, %v429, %v395
    %v432 = vrot.slane %v159, 4
    %vm433 = vcmask 1047556
    %v434 = vsel %vm433, %v432, %v151
    %v435 = vrot.slane %v151, 4
    %v436 = vsel %vm433, %v159, %v435
    %v438 = vunpack.c.l.s4 1983009808
    %v439 = vunpack.c.0.s8 %v438
    %v440 = vperm.slane %v434, %v439
    %v442 = vunpack.c.l.s4 1983009808
    %v443 = vunpack.c.0.s8 %v442
    %v444 = vperm.slane %v436, %v443
    %v445 = vrot.slane %v163, 4
    %v446 = vsel %vm433, %v445, %v155
    %v447 = vrot.slane %v155, 4
    %v448 = vsel %vm433, %v163, %v447
    %v450 = vunpack.c.l.s4 1983009808
    %v451 = vunpack.c.0.s8 %v450
    %v452 = vperm.slane %v446, %v451
    %v454 = vunpack.c.l.s4 1983009808
    %v455 = vunpack.c.0.s8 %v454
    %v456 = vperm.slane %v448, %v455
    %v457 = vrot.slane %v175, 4
    %v458 = vsel %vm433, %v457, %v167
    %v459 = vrot.slane %v167, 4
    %v460 = vsel %vm433, %v175, %v459
    %v462 = vunpack.c.l.s4 1983009808
    %v463 = vunpack.c.0.s8 %v462
    %v464 = vperm.slane %v458, %v463
    %v466 = vunpack.c.l.s4 1983009808
    %v467 = vunpack.c.0.s8 %v466
    %v468 = vperm.slane %v460, %v467
    %v469 = vrot.slane %v179, 4
    %v470 = vsel %vm433, %v469, %v171
    %v471 = vrot.slane %v171, 4
    %v472 = vsel %vm433, %v179, %v471
    %v474 = vunpack.c.l.s4 1983009808
    %v475 = vunpack.c.0.s8 %v474
    %v476 = vperm.slane %v470, %v475
    %v478 = vunpack.c.l.s4 1983009808
    %v479 = vunpack.c.0.s8 %v478
    %v480 = vperm.slane %v472, %v479
    %v481 = vrot.slane %v452, 4
    %v482 = vsel %vm433, %v481, %v440
    %v483 = vrot.slane %v440, 4
    %v484 = vsel %vm433, %v452, %v483
    %v486 = vunpack.c.l.s4 1934713408
    %v487 = vunpack.c.0.s8 %v486
    %v488 = vperm.slane %v482, %v487
    %v490 = vunpack.c.l.s4 1934713408
    %v491 = vunpack.c.0.s8 %v490
    %v492 = vperm.slane %v484, %v491
    %v493 = vrot.slane %v456, 4
    %v494 = vsel %vm433, %v493, %v444
    %v495 = vrot.slane %v444, 4
    %v496 = vsel %vm433, %v456, %v495
    %v498 = vunpack.c.l.s4 1934713408
    %v499 = vunpack.c.0.s8 %v498
    %v500 = vperm.slane %v494, %v499
    %v502 = vunpack.c.l.s4 1934713408
    %v503 = vunpack.c.0.s8 %v502
    %v504 = vperm.slane %v496, %v503
    %v505 = vrot.slane %v476, 4
    %v506 = vsel %vm433, %v505, %v464
    %v507 = vrot.slane %v464, 4
    %v508 = vsel %vm433, %v476, %v507
    %v510 = vunpack.c.l.s4 1934713408
    %v511 = vunpack.c.0.s8 %v510
    %v512 = vperm.slane %v506, %v511
    %v514 = vunpack.c.l.s4 1934713408
    %v515 = vunpack.c.0.s8 %v514
    %v516 = vperm.slane %v508, %v515
    %v517 = vrot.slane %v480, 4
    %v518 = vsel %vm433, %v517, %v468
    %v519 = vrot.slane %v468, 4
    %v520 = vsel %vm433, %v480, %v519
    %v522 = vunpack.c.l.s4 1934713408
    %v523 = vunpack.c.0.s8 %v522
    %v524 = vperm.slane %v518, %v523
    %v526 = vunpack.c.l.s4 1934713408
    %v527 = vunpack.c.0.s8 %v526
    %v528 = vperm.slane %v520, %v527
    %v529 = vrot.slane %v512, 4
    %v530 = vsel %vm433, %v529, %v488
    %v531 = vrot.slane %v488, 4
    %v532 = vsel %vm433, %v512, %v531
    %v533 = vrot.slane %v516, 4
    %v534 = vsel %vm433, %v533, %v492
    %v535 = vrot.slane %v492, 4
    %v536 = vsel %vm433, %v516, %v535
    %v537 = vrot.slane %v524, 4
    %v538 = vsel %vm433, %v537, %v500
    %v539 = vrot.slane %v500, 4
    %v540 = vsel %vm433, %v524, %v539
    %v541 = vrot.slane %v528, 4
    %v542 = vsel %vm433, %v541, %v504
    %v543 = vrot.slane %v504, 4
    %v544 = vsel %vm433, %v528, %v543
    %v545 = vrot.slane %v191, 4
    %v546 = vsel %vm433, %v545, %v183
    %v547 = vrot.slane %v183, 4
    %v548 = vsel %vm433, %v191, %v547
    %v550 = vunpack.c.l.s4 1983009808
    %v551 = vunpack.c.0.s8 %v550
    %v552 = vperm.slane %v546, %v551
    %v554 = vunpack.c.l.s4 1983009808
    %v555 = vunpack.c.0.s8 %v554
    %v556 = vperm.slane %v548, %v555
    %v557 = vrot.slane %v195, 4
    %v558 = vsel %vm433, %v557, %v187
    %v559 = vrot.slane %v187, 4
    %v560 = vsel %vm433, %v195, %v559
    %v562 = vunpack.c.l.s4 1983009808
    %v563 = vunpack.c.0.s8 %v562
    %v564 = vperm.slane %v558, %v563
    %v566 = vunpack.c.l.s4 1983009808
    %v567 = vunpack.c.0.s8 %v566
    %v568 = vperm.slane %v560, %v567
    %v569 = vrot.slane %v564, 4
    %v570 = vsel %vm433, %v569, %v552
    %v571 = vrot.slane %v552, 4
    %v572 = vsel %vm433, %v564, %v571
    %v574 = vunpack.c.l.s4 1934713408
    %v575 = vunpack.c.0.s8 %v574
    %v576 = vperm.slane %v570, %v575
    %v578 = vunpack.c.l.s4 1934713408
    %v579 = vunpack.c.0.s8 %v578
    %v580 = vperm.slane %v572, %v579
    %v581 = vrot.slane %v568, 4
    %v582 = vsel %vm433, %v581, %v556
    %v583 = vrot.slane %v556, 4
    %v584 = vsel %vm433, %v568, %v583
    %v586 = vunpack.c.l.s4 1934713408
    %v587 = vunpack.c.0.s8 %v586
    %v588 = vperm.slane %v582, %v587
    %v590 = vunpack.c.l.s4 1934713408
    %v591 = vunpack.c.0.s8 %v590
    %v592 = vperm.slane %v584, %v591
    %v593 = vrot.slane %v576, 4
    %v594 = vsel %vm433, 0.0, %v593
    %v595 = vrot.slane %v580, 4
    %v596 = vsel %vm433, 0.0, %v595
    %v597 = vrot.slane %v588, 4
    %v598 = vsel %vm433, 0.0, %v597
    %v599 = vrot.slane %v592, 4
    %v600 = vsel %vm433, 0.0, %v599
    %603 = vrot.lane.b32.xlu0 %v532, 16
    %v604 = vpop.permute.xlu0 %603
    %605 = vrot.lane.b32.xlu0 %v594, 16
    %v606 = vpop.permute.xlu0 %605
    %611 = vrot.lane.b32.xlu0 %v534, 32
    %v612 = vpop.permute.xlu0 %611
    %613 = vrot.lane.b32.xlu0 %v580, 32
    %v614 = vpop.permute.xlu0 %613
    %619 = vrot.lane.b32.xlu0 %v536, 48
    %v620 = vpop.permute.xlu0 %619
    %621 = vrot.lane.b32.xlu0 %v596, 48
    %v622 = vpop.permute.xlu0 %621
    %627 = vrot.lane.b32.xlu0 %v538, 64
    %v628 = vpop.permute.xlu0 %627
    %629 = vrot.lane.b32.xlu0 %v588, 64
    %v630 = vpop.permute.xlu0 %629
    %635 = vrot.lane.b32.xlu0 %v540, 80
    %v636 = vpop.permute.xlu0 %635
    %637 = vrot.lane.b32.xlu0 %v598, 80
    %v638 = vpop.permute.xlu0 %637
    %643 = vrot.lane.b32.xlu0 %v542, 96
    %v644 = vpop.permute.xlu0 %643
    %645 = vrot.lane.b32.xlu0 %v592, 96
    %v646 = vpop.permute.xlu0 %645
    %651 = vrot.lane.b32.xlu0 %v544, 112
    %v652 = vpop.permute.xlu0 %651
    %653 = vrot.lane.b32.xlu0 %v600, 112
    %v654 = vpop.permute.xlu0 %653
    %v657 = vsel %vm396, %v530, %v604
    %v658 = vsel %vm396, %v576, %v606
    %v659 = vsel %vm400, %v657, %v612
    %v660 = vsel %vm400, %v658, %v614
    %v661 = vsel %vm71, %v659, %v620
    %v662 = vsel %vm71, %v660, %v622
    %v663 = vsel %vm405, %v661, %v628
    %v664 = vsel %vm405, %v662, %v630
    %v665 = vsel %vm408, %v663, %v636
    %v666 = vsel %vm408, %v664, %v638
    %v667 = vsel %vm411, %v665, %v644
    %v668 = vsel %vm411, %v666, %v646
    %v669 = vsel %vm414, %v667, %v652
    %v670 = vsel %vm414, %v668, %v654
    %v673 = vunpack.c.l.b16 %v121
    %v674 = vunpack.c.l.b16 %v122
    %v675 = vpack.c.b16 %v674, %v673
    %vm676 = vcmask 31744
    %v678 = vsel %vm676, %v675, 0
    %vm680 = vcmask 1041408
    %v681 = vsel %vm680, %v416, 0
    %v683 = vsel %vm680, %v431, 0
    %685 = vmatpush.bf16.msra.mxu0 0
    %686 = vmatpush.bf16.msra.mxu0 0
    %687 = vmatpush.bf16.msra.mxu0 0
    %688 = vmatpush.bf16.msra.mxu0 0
    %689 = vmatpush.bf16.msra.mxu0 0
    %690 = vmatpush.bf16.msra.mxu0 0
    %691 = vmatpush.bf16.msra.mxu0 0
    %692 = vmatpush.bf16.msra.mxu0 %v681
    %693 = vmatmul.bf16.gmra.mxu0 %v678
    %v694 = vpop.f32.mrf.mxu0
    %v695 = vadd.f32 %v669, %v694
    %v696 = vpop.f32.mrf.mxu0
    %v697 = vadd.f32 %v670, %v696
    %698 = vdwg.mxu0
    %699 = vmatpush.bf16.msra.mxu0 0
    %700 = vmatpush.bf16.msra.mxu0 0
    %701 = vmatpush.bf16.msra.mxu0 0
    %702 = vmatpush.bf16.msra.mxu0 0
    %703 = vmatpush.bf16.msra.mxu0 0
    %704 = vmatpush.bf16.msra.mxu0 0
    %705 = vmatpush.bf16.msra.mxu0 0
    %706 = vmatpush.bf16.msra.mxu0 %v683
    %707 = vmatmul.bf16.gmra.mxu0 %v678
    %v708 = vpop.f32.mrf.mxu0
    %v709 = vadd.f32 %v669, %v708
    %v710 = vpop.f32.mrf.mxu0
    %v711 = vadd.f32 %v670, %v710
    %712 = vdwg.mxu0
    %715 = vrot.lane.b32.xlu0 %v695, 112
    %v716 = vpop.permute.xlu0 %715
    %717 = vrot.lane.b32.xlu0 %v697, 112
    %v718 = vpop.permute.xlu0 %717
    %721 = vrot.lane.b32.xlu0 %v695, 96
    %v722 = vpop.permute.xlu0 %721
    %723 = vrot.lane.b32.xlu0 %v697, 96
    %v724 = vpop.permute.xlu0 %723
    %727 = vrot.lane.b32.xlu0 %v695, 80
    %v728 = vpop.permute.xlu0 %727
    %729 = vrot.lane.b32.xlu0 %v697, 80
    %v730 = vpop.permute.xlu0 %729
    %733 = vrot.lane.b32.xlu0 %v695, 64
    %v734 = vpop.permute.xlu0 %733
    %735 = vrot.lane.b32.xlu0 %v697, 64
    %v736 = vpop.permute.xlu0 %735
    %739 = vrot.lane.b32.xlu0 %v695, 48
    %v740 = vpop.permute.xlu0 %739
    %741 = vrot.lane.b32.xlu0 %v697, 48
    %v742 = vpop.permute.xlu0 %741
    %745 = vrot.lane.b32.xlu0 %v695, 32
    %v746 = vpop.permute.xlu0 %745
    %747 = vrot.lane.b32.xlu0 %v697, 32
    %v748 = vpop.permute.xlu0 %747
    %751 = vrot.lane.b32.xlu0 %v695, 16
    %v752 = vpop.permute.xlu0 %751
    %753 = vrot.lane.b32.xlu0 %v697, 16
    %v754 = vpop.permute.xlu0 %753
    %759 = vrot.lane.b32.xlu0 %v709, 112
    %v760 = vpop.permute.xlu0 %759
    %761 = vrot.lane.b32.xlu0 %v711, 112
    %v762 = vpop.permute.xlu0 %761
    %765 = vrot.lane.b32.xlu0 %v709, 96
    %v766 = vpop.permute.xlu0 %765
    %767 = vrot.lane.b32.xlu0 %v711, 96
    %v768 = vpop.permute.xlu0 %767
    %771 = vrot.lane.b32.xlu0 %v709, 80
    %v772 = vpop.permute.xlu0 %771
    %773 = vrot.lane.b32.xlu0 %v711, 80
    %v774 = vpop.permute.xlu0 %773
    %777 = vrot.lane.b32.xlu0 %v709, 64
    %v778 = vpop.permute.xlu0 %777
    %779 = vrot.lane.b32.xlu0 %v711, 64
    %v780 = vpop.permute.xlu0 %779
    %783 = vrot.lane.b32.xlu0 %v709, 48
    %v784 = vpop.permute.xlu0 %783
    %785 = vrot.lane.b32.xlu0 %v711, 48
    %v786 = vpop.permute.xlu0 %785
    %789 = vrot.lane.b32.xlu0 %v709, 32
    %v790 = vpop.permute.xlu0 %789
    %791 = vrot.lane.b32.xlu0 %v711, 32
    %v792 = vpop.permute.xlu0 %791
    %795 = vrot.lane.b32.xlu0 %v709, 16
    %v796 = vpop.permute.xlu0 %795
    %797 = vrot.lane.b32.xlu0 %v711, 16
    %v798 = vpop.permute.xlu0 %797
    %v801 = vrot.slane %v722, 4
    %v802 = vsel %vm433, %v801, %v695
    %v803 = vrot.slane %v695, 4
    %v804 = vsel %vm433, %v722, %v803
    %v806 = vunpack.c.l.s4 1983009808
    %v807 = vunpack.c.0.s8 %v806
    %v808 = vperm.slane %v802, %v807
    %v810 = vunpack.c.l.s4 1983009808
    %v811 = vunpack.c.0.s8 %v810
    %v812 = vperm.slane %v804, %v811
    %v813 = vrot.slane %v728, 4
    %v814 = vsel %vm433, %v813, %v716
    %v815 = vrot.slane %v716, 4
    %v816 = vsel %vm433, %v728, %v815
    %v818 = vunpack.c.l.s4 1983009808
    %v819 = vunpack.c.0.s8 %v818
    %v820 = vperm.slane %v814, %v819
    %v822 = vunpack.c.l.s4 1983009808
    %v823 = vunpack.c.0.s8 %v822
    %v824 = vperm.slane %v816, %v823
    %v825 = vrot.slane %v746, 4
    %v826 = vsel %vm433, %v825, %v734
    %v827 = vrot.slane %v734, 4
    %v828 = vsel %vm433, %v746, %v827
    %v830 = vunpack.c.l.s4 1983009808
    %v831 = vunpack.c.0.s8 %v830
    %v832 = vperm.slane %v826, %v831
    %v834 = vunpack.c.l.s4 1983009808
    %v835 = vunpack.c.0.s8 %v834
    %v836 = vperm.slane %v828, %v835
    %v837 = vrot.slane %v752, 4
    %v838 = vsel %vm433, %v837, %v740
    %v839 = vrot.slane %v740, 4
    %v840 = vsel %vm433, %v752, %v839
    %v842 = vunpack.c.l.s4 1983009808
    %v843 = vunpack.c.0.s8 %v842
    %v844 = vperm.slane %v838, %v843
    %v846 = vunpack.c.l.s4 1983009808
    %v847 = vunpack.c.0.s8 %v846
    %v848 = vperm.slane %v840, %v847
    %v849 = vrot.slane %v820, 4
    %v850 = vsel %vm433, %v849, %v808
    %v851 = vrot.slane %v808, 4
    %v852 = vsel %vm433, %v820, %v851
    %v854 = vunpack.c.l.s4 1934713408
    %v855 = vunpack.c.0.s8 %v854
    %v856 = vperm.slane %v850, %v855
    %v858 = vunpack.c.l.s4 1934713408
    %v859 = vunpack.c.0.s8 %v858
    %v860 = vperm.slane %v852, %v859
    %v861 = vrot.slane %v824, 4
    %v862 = vsel %vm433, %v861, %v812
    %v863 = vrot.slane %v812, 4
    %v864 = vsel %vm433, %v824, %v863
    %v866 = vunpack.c.l.s4 1934713408
    %v867 = vunpack.c.0.s8 %v866
    %v868 = vperm.slane %v862, %v867
    %v870 = vunpack.c.l.s4 1934713408
    %v871 = vunpack.c.0.s8 %v870
    %v872 = vperm.slane %v864, %v871
    %v873 = vrot.slane %v844, 4
    %v874 = vsel %vm433, %v873, %v832
    %v875 = vrot.slane %v832, 4
    %v876 = vsel %vm433, %v844, %v875
    %v878 = vunpack.c.l.s4 1934713408
    %v879 = vunpack.c.0.s8 %v878
    %v880 = vperm.slane %v874, %v879
    %v882 = vunpack.c.l.s4 1934713408
    %v883 = vunpack.c.0.s8 %v882
    %v884 = vperm.slane %v876, %v883
    %v885 = vrot.slane %v848, 4
    %v886 = vsel %vm433, %v885, %v836
    %v887 = vrot.slane %v836, 4
    %v888 = vsel %vm433, %v848, %v887
    %v890 = vunpack.c.l.s4 1934713408
    %v891 = vunpack.c.0.s8 %v890
    %v892 = vperm.slane %v886, %v891
    %v894 = vunpack.c.l.s4 1934713408
    %v895 = vunpack.c.0.s8 %v894
    %v896 = vperm.slane %v888, %v895
    %v897 = vrot.slane %v880, 4
    %v898 = vsel %vm433, %v897, %v856
    %v899 = vrot.slane %v856, 4
    %v900 = vsel %vm433, %v880, %v899
    %v901 = vrot.slane %v884, 4
    %v902 = vsel %vm433, %v901, %v860
    %v903 = vrot.slane %v860, 4
    %v904 = vsel %vm433, %v884, %v903
    %v905 = vrot.slane %v892, 4
    %v906 = vsel %vm433, %v905, %v868
    %v907 = vrot.slane %v868, 4
    %v908 = vsel %vm433, %v892, %v907
    %v909 = vrot.slane %v896, 4
    %v910 = vsel %vm433, %v909, %v872
    %v911 = vrot.slane %v872, 4
    %v912 = vsel %vm433, %v896, %v911
    %v913 = vrot.slane %v766, 4
    %v914 = vsel %vm433, %v913, %v709
    %v915 = vrot.slane %v709, 4
    %v916 = vsel %vm433, %v766, %v915
    %v918 = vunpack.c.l.s4 1983009808
    %v919 = vunpack.c.0.s8 %v918
    %v920 = vperm.slane %v914, %v919
    %v922 = vunpack.c.l.s4 1983009808
    %v923 = vunpack.c.0.s8 %v922
    %v924 = vperm.slane %v916, %v923
    %v925 = vrot.slane %v772, 4
    %v926 = vsel %vm433, %v925, %v760
    %v927 = vrot.slane %v760, 4
    %v928 = vsel %vm433, %v772, %v927
    %v930 = vunpack.c.l.s4 1983009808
    %v931 = vunpack.c.0.s8 %v930
    %v932 = vperm.slane %v926, %v931
    %v934 = vunpack.c.l.s4 1983009808
    %v935 = vunpack.c.0.s8 %v934
    %v936 = vperm.slane %v928, %v935
    %v937 = vrot.slane %v790, 4
    %v938 = vsel %vm433, %v937, %v778
    %v939 = vrot.slane %v778, 4
    %v940 = vsel %vm433, %v790, %v939
    %v942 = vunpack.c.l.s4 1983009808
    %v943 = vunpack.c.0.s8 %v942
    %v944 = vperm.slane %v938, %v943
    %v946 = vunpack.c.l.s4 1983009808
    %v947 = vunpack.c.0.s8 %v946
    %v948 = vperm.slane %v940, %v947
    %v949 = vrot.slane %v796, 4
    %v950 = vsel %vm433, %v949, %v784
    %v951 = vrot.slane %v784, 4
    %v952 = vsel %vm433, %v796, %v951
    %v954 = vunpack.c.l.s4 1983009808
    %v955 = vunpack.c.0.s8 %v954
    %v956 = vperm.slane %v950, %v955
    %v958 = vunpack.c.l.s4 1983009808
    %v959 = vunpack.c.0.s8 %v958
    %v960 = vperm.slane %v952, %v959
    %v961 = vrot.slane %v932, 4
    %v962 = vsel %vm433, %v961, %v920
    %v963 = vrot.slane %v920, 4
    %v964 = vsel %vm433, %v932, %v963
    %v966 = vunpack.c.l.s4 1934713408
    %v967 = vunpack.c.0.s8 %v966
    %v968 = vperm.slane %v962, %v967
    %v970 = vunpack.c.l.s4 1934713408
    %v971 = vunpack.c.0.s8 %v970
    %v972 = vperm.slane %v964, %v971
    %v973 = vrot.slane %v936, 4
    %v974 = vsel %vm433, %v973, %v924
    %v975 = vrot.slane %v924, 4
    %v976 = vsel %vm433, %v936, %v975
    %v978 = vunpack.c.l.s4 1934713408
    %v979 = vunpack.c.0.s8 %v978
    %v980 = vperm.slane %v974, %v979
    %v982 = vunpack.c.l.s4 1934713408
    %v983 = vunpack.c.0.s8 %v982
    %v984 = vperm.slane %v976, %v983
    %v985 = vrot.slane %v956, 4
    %v986 = vsel %vm433, %v985, %v944
    %v987 = vrot.slane %v944, 4
    %v988 = vsel %vm433, %v956, %v987
    %v990 = vunpack.c.l.s4 1934713408
    %v991 = vunpack.c.0.s8 %v990
    %v992 = vperm.slane %v986, %v991
    %v994 = vunpack.c.l.s4 1934713408
    %v995 = vunpack.c.0.s8 %v994
    %v996 = vperm.slane %v988, %v995
    %v997 = vrot.slane %v960, 4
    %v998 = vsel %vm433, %v997, %v948
    %v999 = vrot.slane %v948, 4
    %v1000 = vsel %vm433, %v960, %v999
    %v1002 = vunpack.c.l.s4 1934713408
    %v1003 = vunpack.c.0.s8 %v1002
    %v1004 = vperm.slane %v998, %v1003
    %v1006 = vunpack.c.l.s4 1934713408
    %v1007 = vunpack.c.0.s8 %v1006
    %v1008 = vperm.slane %v1000, %v1007
    %v1009 = vrot.slane %v992, 4
    %v1010 = vsel %vm433, %v1009, %v968
    %v1011 = vrot.slane %v968, 4
    %v1012 = vsel %vm433, %v992, %v1011
    %v1013 = vrot.slane %v996, 4
    %v1014 = vsel %vm433, %v1013, %v972
    %v1015 = vrot.slane %v972, 4
    %v1016 = vsel %vm433, %v996, %v1015
    %v1017 = vrot.slane %v1004, 4
    %v1018 = vsel %vm433, %v1017, %v980
    %v1019 = vrot.slane %v980, 4
    %v1020 = vsel %vm433, %v1004, %v1019
    %v1021 = vrot.slane %v1008, 4
    %v1022 = vsel %vm433, %v1021, %v984
    %v1023 = vrot.slane %v984, 4
    %v1024 = vsel %vm433, %v1008, %v1023
    %v1025 = vrot.slane %v724, 4
    %v1026 = vsel %vm433, %v1025, %v697
    %v1028 = vunpack.c.l.s4 1983009808
    %v1029 = vunpack.c.0.s8 %v1028
    %v1030 = vperm.slane %v1026, %v1029
    %v1031 = vrot.slane %v730, 4
    %v1032 = vsel %vm433, %v1031, %v718
    %v1034 = vunpack.c.l.s4 1983009808
    %v1035 = vunpack.c.0.s8 %v1034
    %v1036 = vperm.slane %v1032, %v1035
    %v1037 = vrot.slane %v748, 4
    %v1038 = vsel %vm433, %v1037, %v736
    %v1040 = vunpack.c.l.s4 1983009808
    %v1041 = vunpack.c.0.s8 %v1040
    %v1042 = vperm.slane %v1038, %v1041
    %v1043 = vrot.slane %v754, 4
    %v1044 = vsel %vm433, %v1043, %v742
    %v1046 = vunpack.c.l.s4 1983009808
    %v1047 = vunpack.c.0.s8 %v1046
    %v1048 = vperm.slane %v1044, %v1047
    %v1049 = vrot.slane %v1036, 4
    %v1050 = vsel %vm433, %v1049, %v1030
    %v1051 = vrot.slane %v1030, 4
    %v1052 = vsel %vm433, %v1036, %v1051
    %v1054 = vunpack.c.l.s4 1934713408
    %v1055 = vunpack.c.0.s8 %v1054
    %v1056 = vperm.slane %v1050, %v1055
    %v1058 = vunpack.c.l.s4 1934713408
    %v1059 = vunpack.c.0.s8 %v1058
    %v1060 = vperm.slane %v1052, %v1059
    %v1061 = vrot.slane %v1048, 4
    %v1062 = vsel %vm433, %v1061, %v1042
    %v1063 = vrot.slane %v1042, 4
    %v1064 = vsel %vm433, %v1048, %v1063
    %v1066 = vunpack.c.l.s4 1934713408
    %v1067 = vunpack.c.0.s8 %v1066
    %v1068 = vperm.slane %v1062, %v1067
    %v1070 = vunpack.c.l.s4 1934713408
    %v1071 = vunpack.c.0.s8 %v1070
    %v1072 = vperm.slane %v1064, %v1071
    %v1073 = vrot.slane %v1068, 4
    %v1074 = vsel %vm433, %v1073, %v1056
    %v1075 = vrot.slane %v1056, 4
    %v1076 = vsel %vm433, %v1068, %v1075
    %v1077 = vrot.slane %v1072, 4
    %v1078 = vsel %vm433, %v1077, %v1060
    %v1079 = vrot.slane %v1060, 4
    %v1080 = vsel %vm433, %v1072, %v1079
    %v1081 = vrot.slane %v768, 4
    %v1082 = vsel %vm433, %v1081, %v711
    %v1084 = vunpack.c.l.s4 1983009808
    %v1085 = vunpack.c.0.s8 %v1084
    %v1086 = vperm.slane %v1082, %v1085
    %v1087 = vrot.slane %v774, 4
    %v1088 = vsel %vm433, %v1087, %v762
    %v1090 = vunpack.c.l.s4 1983009808
    %v1091 = vunpack.c.0.s8 %v1090
    %v1092 = vperm.slane %v1088, %v1091
    %v1093 = vrot.slane %v792, 4
    %v1094 = vsel %vm433, %v1093, %v780
    %v1096 = vunpack.c.l.s4 1983009808
    %v1097 = vunpack.c.0.s8 %v1096
    %v1098 = vperm.slane %v1094, %v1097
    %v1099 = vrot.slane %v798, 4
    %v1100 = vsel %vm433, %v1099, %v786
    %v1102 = vunpack.c.l.s4 1983009808
    %v1103 = vunpack.c.0.s8 %v1102
    %v1104 = vperm.slane %v1100, %v1103
    %v1105 = vrot.slane %v1092, 4
    %v1106 = vsel %vm433, %v1105, %v1086
    %v1107 = vrot.slane %v1086, 4
    %v1108 = vsel %vm433, %v1092, %v1107
    %v1110 = vunpack.c.l.s4 1934713408
    %v1111 = vunpack.c.0.s8 %v1110
    %v1112 = vperm.slane %v1106, %v1111
    %v1114 = vunpack.c.l.s4 1934713408
    %v1115 = vunpack.c.0.s8 %v1114
    %v1116 = vperm.slane %v1108, %v1115
    %v1117 = vrot.slane %v1104, 4
    %v1118 = vsel %vm433, %v1117, %v1098
    %v1119 = vrot.slane %v1098, 4
    %v1120 = vsel %vm433, %v1104, %v1119
    %v1122 = vunpack.c.l.s4 1934713408
    %v1123 = vunpack.c.0.s8 %v1122
    %v1124 = vperm.slane %v1118, %v1123
    %v1126 = vunpack.c.l.s4 1934713408
    %v1127 = vunpack.c.0.s8 %v1126
    %v1128 = vperm.slane %v1120, %v1127
    %v1129 = vrot.slane %v1124, 4
    %v1130 = vsel %vm433, %v1129, %v1112
    %v1131 = vrot.slane %v1112, 4
    %v1132 = vsel %vm433, %v1124, %v1131
    %v1133 = vrot.slane %v1128, 4
    %v1134 = vsel %vm433, %v1133, %v1116
    %v1135 = vrot.slane %v1116, 4
    %v1136 = vsel %vm433, %v1128, %v1135
    %v1137 = vmax.f32 %v898, 0.0
    %v1138 = vmax.f32 %v1010, 0.0
    %v1139 = vmax.f32 %v900, 0.0
    %v1140 = vmax.f32 %v1012, 0.0
    %v1141 = vmax.f32 %v902, 0.0
    %v1142 = vmax.f32 %v1014, 0.0
    %v1143 = vmax.f32 %v904, 0.0
    %v1144 = vmax.f32 %v1016, 0.0
    %v1145 = vmax.f32 %v906, 0.0
    %v1146 = vmax.f32 %v1018, 0.0
    %v1147 = vmax.f32 %v908, 0.0
    %v1148 = vmax.f32 %v1020, 0.0
    %v1149 = vmax.f32 %v910, 0.0
    %v1150 = vmax.f32 %v1022, 0.0
    %v1151 = vmax.f32 %v912, 0.0
    %v1152 = vmax.f32 %v1024, 0.0
    %v1153 = vmax.f32 %v1074, 0.0
    %v1154 = vmax.f32 %v1130, 0.0
    %v1155 = vmax.f32 %v1076, 0.0
    %v1156 = vmax.f32 %v1132, 0.0
    %v1157 = vmax.f32 %v1078, 0.0
    %v1158 = vmax.f32 %v1134, 0.0
    %v1159 = vmax.f32 %v1080, 0.0
    %v1160 = vmax.f32 %v1136, 0.0
    %v1161 = vmax.f32 %v1137, %v1145
    %v1162 = vmax.f32 %v1138, %v1146
    %v1163 = vmax.f32 %v1139, %v1147
    %v1164 = vmax.f32 %v1140, %v1148
    %v1165 = vmax.f32 %v1141, %v1149
    %v1166 = vmax.f32 %v1142, %v1150
    %v1167 = vmax.f32 %v1143, %v1151
    %v1168 = vmax.f32 %v1144, %v1152
    %v1169 = vmax.f32 %v1161, %v1153
    %v1170 = vmax.f32 %v1162, %v1154
    %v1171 = vmax.f32 %v1163, %v1155
    %v1172 = vmax.f32 %v1164, %v1156
    %v1173 = vmax.f32 %v1165, %v1157
    %v1174 = vmax.f32 %v1166, %v1158
    %v1175 = vmax.f32 %v1167, %v1159
    %v1176 = vmax.f32 %v1168, %v1160
    %1177 = vst.msk [vmem:[#allocation2] sm:$0xff] %vm396, %v1169
    %1178 = vst.msk [vmem:[#allocation2 + $0x8] sm:$0xff] %vm396, %v1170
    %1179 = vst.msk [vmem:[#allocation2 + $0x10] sm:$0xff] %vm396, %v1171
    %1180 = vst.msk [vmem:[#allocation2 + $0x18] sm:$0xff] %vm396, %v1172
    %1181 = vst.msk [vmem:[#allocation2 + $0x20] sm:$0xff] %vm396, %v1173
    %1182 = vst.msk [vmem:[#allocation2 + $0x28] sm:$0xff] %vm396, %v1174
    %1183 = vst.msk [vmem:[#allocation2 + $0x30] sm:$0xff] %vm396, %v1175
    %1184 = vst.msk [vmem:[#allocation2 + $0x38] sm:$0xff] %vm396, %v1176
    // Predicated region
    $region18: #{tpu_custom_call.1} parent=1 // pred_check
      _
    $region19: #{tpu_custom_call.1} parent=1 // pred_check_branch
      %1186 = sbr.rel (0) target = $region21
    $region20: #{tpu_custom_call.1} parent=1 // pred_region
      %1188 = vsyncadd [#allocation3], 0
      %s1189 = sshll.u32 [#allocation2], 4
      %s1190 = int_to_ptr.vmem [resolvable:$true] %s1189
      %s1191 = sshll.u32 %s4, 4
      %s1192 = int_to_ptr.hbm [resolvable:$true] %s1191
      %1197 = dma.vmem_to_hbm [thread:$0]  %s1190, 1024, %s1192, [#allocation3], 128, 128, 8
    $region21: #{tpu_custom_call.1} parent=1 // pred_fallthru
      _
    // Predicated region
    $region22: #{tpu_custom_call.1} parent=1 // pred_check
      _
    $region23: #{tpu_custom_call.1} parent=1 // pred_check_branch
      %1199 = sbr.rel (0) target = $region25
    $region24: #{tpu_custom_call.1} parent=1 // pred_region
      %1201 = dma.done [#allocation3], 1024
    $region25: #{tpu_custom_call.1} parent=1 // pred_fallthru
      _
    %1202 = vsyncpa [#allocation3], 1

</llo_original>
